<compile_context>
chip_gen: v7x
topology: tpu7x:2x2x1
jax: 0.10.0
libtpu: 0.0.40
codegen_flags: <defaults>
</compile_context>

<pallas_src>
import functools

import jax
import jax.numpy as jnp
import numpy as np
from jax import lax
from jax.experimental import pallas as pl
from jax.experimental.pallas import tpu as pltpu


def _round_up(x: int, m: int) -> int:
    return ((x + m - 1) // m) * m


# ----------------------------- Pallas kernel -------------------------------- #

def _conv_in_lrelu_kernel(x_ref, w_ref, p_ref, mask_ref, o_ref, *,
                          k, s, wq, n_valid, eps, negative_slope):
    """One sample of Conv(kxk, stride s, 'same') + InstanceNorm + LeakyReLU.

    x_ref:    (1, s*s, C_in, F)  phase-decomposed, spatially flattened, zero-padded
                                 input (bf16 or f32); F is a multiple of 128.
    w_ref:    (k*k, C_out, C_in) per-tap weight matrices (same dtype as x_ref).
    p_ref:    (C_out, 2)         packed [gamma, beta] (f32).
    mask_ref: (1, TW)            1.0 on valid output columns, 0.0 on the Wq-W_out
                                 bleed columns and the 128-alignment tail (f32).
    o_ref:    (1, C_out, TW)     lane-dense "wide" output, TW = round_up(H_out*Wq, 128).
    """
    c_out = o_ref.shape[1]
    tw = o_ref.shape[2]

    # ---- convolution: in-kernel im2col as k*k accumulated MXU matmuls ----
    acc = jnp.zeros((c_out, tw), jnp.float32)
    for dy in range(k):
        for dx in range(k):
            ph = (dy % s) * s + (dx % s)          # phase plane (space-to-depth)
            start = (dy // s) * wq + (dx // s)    # static flat offset of this tap
            x_tap = x_ref[0, ph, :, start:start + tw]            # (C_in, TW)
            w_tap = w_ref[dy * k + dx]                           # (C_out, C_in)
            acc = acc + jnp.dot(w_tap, x_tap,
                                preferred_element_type=jnp.float32)
    # NOTE: conv bias omitted - exactly cancelled by the InstanceNorm mean subtraction.

    # ---- InstanceNorm: masked single-pass sum / sum-of-squares (f32) ----
    vm = mask_ref[...]                                           # (1, TW)
    inv_n = 1.0 / float(n_valid)
    s1 = jnp.sum(acc * vm, axis=1, keepdims=True)                # (C_out, 1)
    s2 = jnp.sum(acc * acc * vm, axis=1, keepdims=True)
    mean = s1 * inv_n
    var = s2 * inv_n - mean * mean
    gamma = p_ref[:, 0:1]
    beta = p_ref[:, 1:2]
    scale = gamma * lax.rsqrt(var + eps)                         # (C_out, 1)
    shift = beta - mean * scale
    y = acc * scale + shift                                      # single FMA epilogue

    # ---- LeakyReLU ----
    y = jnp.where(y >= 0, y, negative_slope * y)
    o_ref[0] = y.astype(o_ref.dtype)


# ------------------------- per-block wrapper (glue) -------------------------- #

def conv_dropout_norm_relu(x, w, b, gamma, beta, *, stride, eps=1e-5,
                           negative_slope=0.01, compute_dtype=jnp.bfloat16):
    """One ConvDropoutNormReLU block. x: (N, C_in, H, W) NCHW -> NCHW."""
    del b  # bias is mathematically cancelled by the InstanceNorm mean subtraction
    N, C_in, H, W = x.shape
    C_out, _, k, _ = w.shape
    s = int(stride)
    p = (k - 1) // 2                              # PyTorch-style symmetric 'same' pad
    H_pad, W_pad = H + 2 * p, W + 2 * p
    H_out = (H_pad - k) // s + 1
    W_out = (W_pad - k) // s + 1
    Hq = -(-H_pad // s)                           # phase-grid rows (ceil)
    Wq = -(-W_pad // s)                           # phase-grid cols (ceil)
    qmax = (k - 1) // s                           # max in-phase tap offset
    TW = _round_up(H_out * Wq, 128)               # lane-dense wide output width
    F = _round_up(max(Hq * Wq, qmax * Wq + qmax + TW), 128)
    assert F >= qmax * Wq + qmax + TW             # every tap slice stays in-bounds

    # --- prepare input: pad -> phase decompose (space-to-depth) -> flatten (1x traffic)
    x_pad = jnp.pad(x, ((0, 0), (0, 0), (p, p), (p, p)))
    phases = []
    for i in range(s):
        for j in range(s):
            ph = x_pad[:, :, i::s, j::s]
            ph = jnp.pad(ph, ((0, 0), (0, 0),
                              (0, Hq - ph.shape[2]), (0, Wq - ph.shape[3])))
            phases.append(ph)
    xp = jnp.stack(phases, axis=1).reshape(N, s * s, C_in, Hq * Wq)
    xp = jnp.pad(xp, ((0, 0), (0, 0), (0, 0), (0, F - Hq * Wq)))
    xp = xp.astype(compute_dtype)

    # per-tap weight matrices (k*k, C_out, C_in), bf16 for the MXU
    w_taps = jnp.transpose(w, (2, 3, 0, 1)).reshape(k * k, C_out, C_in)
    w_taps = w_taps.astype(compute_dtype)
    # pack gamma/beta into one small parameter tile (single DMA)
    gb = jnp.stack([gamma, beta], axis=1).astype(jnp.float32)      # (C_out, 2)

    # static validity mask over the wide columns (built host-side, tiny)
    cols = np.arange(TW)
    mask_np = ((cols % Wq < W_out) & (cols < H_out * Wq)).astype(np.float32)
    mask = jnp.asarray(mask_np[None, :])

    kernel = functools.partial(
        _conv_in_lrelu_kernel, k=k, s=s, wq=Wq, n_valid=H_out * W_out,
        eps=eps, negative_slope=negative_slope)

    # VMEM budget: 2x double-buffered in/out blocks + resident weights/params, <=48 MiB
    itemsize = jnp.dtype(compute_dtype).itemsize
    x_blk = s * s * C_in * F * itemsize
    o_blk = C_out * TW * 4
    vmem_bytes = int(2 * (x_blk + o_blk) + k * k * C_out * C_in * itemsize
                     + C_out * 2 * 4 + TW * 4 + (4 << 20))
    vmem_bytes = min(max(vmem_bytes, 32 << 20), 48 << 20)

    flops = 2 * N * C_out * C_in * k * k * H_out * W_out
    bytes_accessed = int(xp.size * itemsize + w_taps.size * itemsize
                         + N * C_out * TW * 4)
    cost = pl.CostEstimate(flops=flops, transcendentals=N * C_out,
                           bytes_accessed=bytes_accessed)

    out_wide = pl.pallas_call(
        kernel,
        out_shape=jax.ShapeDtypeStruct((N, C_out, TW), jnp.float32),
        grid=(N,),
        in_specs=[
            pl.BlockSpec((1, s * s, C_in, F), lambda n: (n, 0, 0, 0)),
            pl.BlockSpec((k * k, C_out, C_in), lambda n: (0, 0, 0)),
            pl.BlockSpec((C_out, 2), lambda n: (0, 0)),
            pl.BlockSpec((1, TW), lambda n: (0, 0)),
        ],
        out_specs=pl.BlockSpec((1, C_out, TW), lambda n: (n, 0, 0)),
        compiler_params=pltpu.CompilerParams(
            dimension_semantics=("parallel",),
            vmem_limit_bytes=vmem_bytes),
        cost_estimate=cost,
    )(xp, w_taps, gb, mask)

    # wide (N, C_out, H_out*Wq [pad]) -> NCHW (N, C_out, H_out, W_out); no transposes.
    out = out_wide[:, :, :H_out * Wq].reshape(N, C_out, H_out, Wq)
    return out[:, :, :, :W_out]


# ----------------------------- StackedConvBlocks ----------------------------- #

def init_stacked_conv_blocks(key, num_convs, input_channels, output_channels,
                             kernel_size):
    """Deterministic parameter init (matches module __init__ shapes)."""
    if not isinstance(output_channels, (list, tuple)):
        output_channels = [output_channels] * num_convs
    params = []
    c_in = input_channels
    for i in range(num_convs):
        c_out = output_channels[i]
        key, kw, kb, kg, kbe = jax.random.split(key, 5)
        fan_in = c_in * kernel_size * kernel_size
        w = jax.random.normal(kw, (c_out, c_in, kernel_size, kernel_size),
                              jnp.float32) * (1.0 / np.sqrt(fan_in))
        b = jax.random.normal(kb, (c_out,), jnp.float32) * 0.01
        # perturbed around the PyTorch init (gamma=1, beta=0) so the affine path is tested
        gamma = 1.0 + 0.1 * jax.random.normal(kg, (c_out,), jnp.float32)
        beta = 0.1 * jax.random.normal(kbe, (c_out,), jnp.float32)
        params.append(dict(w=w, b=b, gamma=gamma, beta=beta))
        c_in = c_out
    return params


def stacked_conv_blocks_forward(x, params, initial_stride,
                                compute_dtype=jnp.bfloat16):
    """Forward of StackedConvBlocks: first block uses initial_stride, rest stride 1."""
    out = x
    for i, prm in enumerate(params):
        s = initial_stride if i == 0 else 1
        out = conv_dropout_norm_relu(out, prm["w"], prm["b"], prm["gamma"],
                                     prm["beta"], stride=s,
                                     compute_dtype=compute_dtype)
    return out


# ------------------------------- reference ----------------------------------- #

def _reference_block(x, w, b, gamma, beta, stride, eps=1e-5, slope=0.01):
    k = w.shape[2]
    p = (k - 1) // 2
    y = lax.conv_general_dilated(
        x, w, window_strides=(stride, stride), padding=[(p, p), (p, p)],
        dimension_numbers=("NCHW", "OIHW", "NCHW"),
        precision=lax.Precision.HIGHEST)
    y = y + b[None, :, None, None]
    mean = jnp.mean(y, axis=(2, 3), keepdims=True)
    var = jnp.mean((y - mean) ** 2, axis=(2, 3), keepdims=True)
    y = (y - mean) * lax.rsqrt(var + eps)
    y = y * gamma[None, :, None, None] + beta[None, :, None, None]
    return jnp.where(y >= 0, y, slope * y)


def _reference_forward(x, params, initial_stride):
    out = x
    for i, prm in enumerate(params):
        s = initial_stride if i == 0 else 1
        out = _reference_block(out, prm["w"], prm["b"], prm["gamma"],
                               prm["beta"], s)
    return out


# --------------------------------- main --------------------------------------- #

if __name__ == "__main__":
    key = jax.random.PRNGKey(0)
    key, kx = jax.random.split(key)

    # StackedConvBlocks(num_convs=2, Conv2d-like, 4 -> 8 channels, k=3, initial_stride=2)
    num_convs = 2
    input_channels = 4
    output_channels = 8
    kernel_size = 3
    initial_stride = 2

    x = jax.random.normal(kx, (2, input_channels, 16, 16), jnp.float32)  # NCHW
    params = init_stacked_conv_blocks(key, num_convs, input_channels,
                                      output_channels, kernel_size)

    ref = jax.block_until_ready(_reference_forward(x, params, initial_stride))
    assert ref.shape == (2, output_channels, 8, 8), ref.shape

    # f32-matmul path: algorithmic check (tolerance covers MXU f32 pass strategy).
    out_f32 = jax.block_until_ready(
        stacked_conv_blocks_forward(x, params, initial_stride,
                                    compute_dtype=jnp.float32))
    assert out_f32.shape == ref.shape, out_f32.shape
    np.testing.assert_allclose(np.asarray(out_f32), np.asarray(ref),
                               rtol=1e-2, atol=1e-2)

    # default optimized path: bf16 MXU inputs, f32 accumulation / statistics.
    out = jax.block_until_ready(
        stacked_conv_blocks_forward(x, params, initial_stride))
    assert out.shape == ref.shape, out.shape
    np.testing.assert_allclose(np.asarray(out), np.asarray(ref),
                               rtol=5e-2, atol=5e-2)

    print("KERNEL_OK")
</pallas_src>

<mosaic_0001>
module attributes {stable_mosaic.version = 11 : i64} {
  func.func @_conv_in_lrelu_kernel(%arg0: i32, %arg1: memref<1x4x4x256xf32, #tpu.memory_space<vmem>>, %arg2: memref<9x8x4xf32, #tpu.memory_space<vmem>>, %arg3: memref<8x2xf32, #tpu.memory_space<vmem>>, %arg4: memref<1x128xf32, #tpu.memory_space<vmem>>, %arg5: memref<1x8x128xf32, #tpu.memory_space<vmem>>) attributes {dimension_semantics = [#tpu.dimension_semantics<parallel>], iteration_bounds = array<i64: 2>, scalar_prefetch = 0 : i64, scratch_operands = 0 : i64, tpu.core_type = #tpu.core_type<tc>, window_params = [{transform_indices = @transform_0, window_bounds = array<i64: 1, 4, 4, 256>}, {pipeline_mode = #tpu.pipeline_mode<synchronous>, transform_indices = @transform_1, window_bounds = array<i64: 9, 8, 4>}, {pipeline_mode = #tpu.pipeline_mode<synchronous>, transform_indices = @transform_2, window_bounds = array<i64: 8, 2>}, {pipeline_mode = #tpu.pipeline_mode<synchronous>, transform_indices = @transform_3, window_bounds = array<i64: 1, 128>}, {transform_indices = @transform_4, window_bounds = array<i64: 1, 8, 128>}]} {
    %cst = arith.constant 0.000000e+00 : f32
    %0 = vector.broadcast %cst : f32 to vector<8x128xf32>
    %c0 = arith.constant 0 : index
    %c0_0 = arith.constant 0 : index
    %c0_1 = arith.constant 0 : index
    %c0_2 = arith.constant 0 : index
    %1 = vector.load %arg1[%c0, %c0_0, %c0_1, %c0_2] : memref<1x4x4x256xf32, #tpu.memory_space<vmem>>, vector<1x1x4x128xf32>
    %2 = vector.shape_cast %1 : vector<1x1x4x128xf32> to vector<4x128xf32>
    %c0_3 = arith.constant 0 : index
    %c0_4 = arith.constant 0 : index
    %c0_5 = arith.constant 0 : index
    %3 = vector.load %arg2[%c0_3, %c0_4, %c0_5] : memref<9x8x4xf32, #tpu.memory_space<vmem>>, vector<1x8x4xf32>
    %4 = vector.shape_cast %3 : vector<1x8x4xf32> to vector<8x4xf32>
    %cst_6 = arith.constant dense<0.000000e+00> : vector<8x128xf32>
    %5 = tpu.matmul %4, %2, %cst_6 {dimension_numbers = #tpu.dot_dimension_numbers<[1], [0], [0], [1], [0, 0, 1, 1], [], []>} : vector<8x4xf32>, vector<4x128xf32>, vector<8x128xf32> -> vector<8x128xf32>
    %6 = arith.addf %0, %5 : vector<8x128xf32>
    %c0_7 = arith.constant 0 : index
    %c1 = arith.constant 1 : index
    %c0_8 = arith.constant 0 : index
    %c0_9 = arith.constant 0 : index
    %7 = vector.load %arg1[%c0_7, %c1, %c0_8, %c0_9] : memref<1x4x4x256xf32, #tpu.memory_space<vmem>>, vector<1x1x4x128xf32>
    %8 = vector.shape_cast %7 : vector<1x1x4x128xf32> to vector<4x128xf32>
    %c1_10 = arith.constant 1 : index
    %c0_11 = arith.constant 0 : index
    %c0_12 = arith.constant 0 : index
    %9 = vector.load %arg2[%c1_10, %c0_11, %c0_12] : memref<9x8x4xf32, #tpu.memory_space<vmem>>, vector<1x8x4xf32>
    %10 = vector.shape_cast %9 : vector<1x8x4xf32> to vector<8x4xf32>
    %cst_13 = arith.constant dense<0.000000e+00> : vector<8x128xf32>
    %11 = tpu.matmul %10, %8, %cst_13 {dimension_numbers = #tpu.dot_dimension_numbers<[1], [0], [0], [1], [0, 0, 1, 1], [], []>} : vector<8x4xf32>, vector<4x128xf32>, vector<8x128xf32> -> vector<8x128xf32>
    %12 = arith.addf %6, %11 : vector<8x128xf32>
    %c0_14 = arith.constant 0 : index
    %c0_15 = arith.constant 0 : index
    %c0_16 = arith.constant 0 : index
    %c1_17 = arith.constant 1 : index
    %13 = vector.load %arg1[%c0_14, %c0_15, %c0_16, %c1_17] : memref<1x4x4x256xf32, #tpu.memory_space<vmem>>, vector<1x1x4x128xf32>
    %14 = vector.shape_cast %13 : vector<1x1x4x128xf32> to vector<4x128xf32>
    %c2 = arith.constant 2 : index
    %c0_18 = arith.constant 0 : index
    %c0_19 = arith.constant 0 : index
    %15 = vector.load %arg2[%c2, %c0_18, %c0_19] : memref<9x8x4xf32, #tpu.memory_space<vmem>>, vector<1x8x4xf32>
    %16 = vector.shape_cast %15 : vector<1x8x4xf32> to vector<8x4xf32>
    %cst_20 = arith.constant dense<0.000000e+00> : vector<8x128xf32>
    %17 = tpu.matmul %16, %14, %cst_20 {dimension_numbers = #tpu.dot_dimension_numbers<[1], [0], [0], [1], [0, 0, 1, 1], [], []>} : vector<8x4xf32>, vector<4x128xf32>, vector<8x128xf32> -> vector<8x128xf32>
    %18 = arith.addf %12, %17 : vector<8x128xf32>
    %c0_21 = arith.constant 0 : index
    %c2_22 = arith.constant 2 : index
    %c0_23 = arith.constant 0 : index
    %c0_24 = arith.constant 0 : index
    %19 = vector.load %arg1[%c0_21, %c2_22, %c0_23, %c0_24] : memref<1x4x4x256xf32, #tpu.memory_space<vmem>>, vector<1x1x4x128xf32>
    %20 = vector.shape_cast %19 : vector<1x1x4x128xf32> to vector<4x128xf32>
    %c3 = arith.constant 3 : index
    %c0_25 = arith.constant 0 : index
    %c0_26 = arith.constant 0 : index
    %21 = vector.load %arg2[%c3, %c0_25, %c0_26] : memref<9x8x4xf32, #tpu.memory_space<vmem>>, vector<1x8x4xf32>
    %22 = vector.shape_cast %21 : vector<1x8x4xf32> to vector<8x4xf32>
    %cst_27 = arith.constant dense<0.000000e+00> : vector<8x128xf32>
    %23 = tpu.matmul %22, %20, %cst_27 {dimension_numbers = #tpu.dot_dimension_numbers<[1], [0], [0], [1], [0, 0, 1, 1], [], []>} : vector<8x4xf32>, vector<4x128xf32>, vector<8x128xf32> -> vector<8x128xf32>
    %24 = arith.addf %18, %23 : vector<8x128xf32>
    %c0_28 = arith.constant 0 : index
    %c3_29 = arith.constant 3 : index
    %c0_30 = arith.constant 0 : index
    %c0_31 = arith.constant 0 : index
    %25 = vector.load %arg1[%c0_28, %c3_29, %c0_30, %c0_31] : memref<1x4x4x256xf32, #tpu.memory_space<vmem>>, vector<1x1x4x128xf32>
    %26 = vector.shape_cast %25 : vector<1x1x4x128xf32> to vector<4x128xf32>
    %c4 = arith.constant 4 : index
    %c0_32 = arith.constant 0 : index
    %c0_33 = arith.constant 0 : index
    %27 = vector.load %arg2[%c4, %c0_32, %c0_33] : memref<9x8x4xf32, #tpu.memory_space<vmem>>, vector<1x8x4xf32>
    %28 = vector.shape_cast %27 : vector<1x8x4xf32> to vector<8x4xf32>
    %cst_34 = arith.constant dense<0.000000e+00> : vector<8x128xf32>
    %29 = tpu.matmul %28, %26, %cst_34 {dimension_numbers = #tpu.dot_dimension_numbers<[1], [0], [0], [1], [0, 0, 1, 1], [], []>} : vector<8x4xf32>, vector<4x128xf32>, vector<8x128xf32> -> vector<8x128xf32>
    %30 = arith.addf %24, %29 : vector<8x128xf32>
    %c0_35 = arith.constant 0 : index
    %c2_36 = arith.constant 2 : index
    %c0_37 = arith.constant 0 : index
    %c1_38 = arith.constant 1 : index
    %31 = vector.load %arg1[%c0_35, %c2_36, %c0_37, %c1_38] : memref<1x4x4x256xf32, #tpu.memory_space<vmem>>, vector<1x1x4x128xf32>
    %32 = vector.shape_cast %31 : vector<1x1x4x128xf32> to vector<4x128xf32>
    %c5 = arith.constant 5 : index
    %c0_39 = arith.constant 0 : index
    %c0_40 = arith.constant 0 : index
    %33 = vector.load %arg2[%c5, %c0_39, %c0_40] : memref<9x8x4xf32, #tpu.memory_space<vmem>>, vector<1x8x4xf32>
    %34 = vector.shape_cast %33 : vector<1x8x4xf32> to vector<8x4xf32>
    %cst_41 = arith.constant dense<0.000000e+00> : vector<8x128xf32>
    %35 = tpu.matmul %34, %32, %cst_41 {dimension_numbers = #tpu.dot_dimension_numbers<[1], [0], [0], [1], [0, 0, 1, 1], [], []>} : vector<8x4xf32>, vector<4x128xf32>, vector<8x128xf32> -> vector<8x128xf32>
    %36 = arith.addf %30, %35 : vector<8x128xf32>
    %c0_42 = arith.constant 0 : index
    %c0_43 = arith.constant 0 : index
    %c0_44 = arith.constant 0 : index
    %c9 = arith.constant 9 : index
    %37 = vector.load %arg1[%c0_42, %c0_43, %c0_44, %c9] : memref<1x4x4x256xf32, #tpu.memory_space<vmem>>, vector<1x1x4x128xf32>
    %38 = vector.shape_cast %37 : vector<1x1x4x128xf32> to vector<4x128xf32>
    %c6 = arith.constant 6 : index
    %c0_45 = arith.constant 0 : index
    %c0_46 = arith.constant 0 : index
    %39 = vector.load %arg2[%c6, %c0_45, %c0_46] : memref<9x8x4xf32, #tpu.memory_space<vmem>>, vector<1x8x4xf32>
    %40 = vector.shape_cast %39 : vector<1x8x4xf32> to vector<8x4xf32>
    %cst_47 = arith.constant dense<0.000000e+00> : vector<8x128xf32>
    %41 = tpu.matmul %40, %38, %cst_47 {dimension_numbers = #tpu.dot_dimension_numbers<[1], [0], [0], [1], [0, 0, 1, 1], [], []>} : vector<8x4xf32>, vector<4x128xf32>, vector<8x128xf32> -> vector<8x128xf32>
    %42 = arith.addf %36, %41 : vector<8x128xf32>
    %c0_48 = arith.constant 0 : index
    %c1_49 = arith.constant 1 : index
    %c0_50 = arith.constant 0 : index
    %c9_51 = arith.constant 9 : index
    %43 = vector.load %arg1[%c0_48, %c1_49, %c0_50, %c9_51] : memref<1x4x4x256xf32, #tpu.memory_space<vmem>>, vector<1x1x4x128xf32>
    %44 = vector.shape_cast %43 : vector<1x1x4x128xf32> to vector<4x128xf32>
    %c7 = arith.constant 7 : index
    %c0_52 = arith.constant 0 : index
    %c0_53 = arith.constant 0 : index
    %45 = vector.load %arg2[%c7, %c0_52, %c0_53] : memref<9x8x4xf32, #tpu.memory_space<vmem>>, vector<1x8x4xf32>
    %46 = vector.shape_cast %45 : vector<1x8x4xf32> to vector<8x4xf32>
    %cst_54 = arith.constant dense<0.000000e+00> : vector<8x128xf32>
    %47 = tpu.matmul %46, %44, %cst_54 {dimension_numbers = #tpu.dot_dimension_numbers<[1], [0], [0], [1], [0, 0, 1, 1], [], []>} : vector<8x4xf32>, vector<4x128xf32>, vector<8x128xf32> -> vector<8x128xf32>
    %48 = arith.addf %42, %47 : vector<8x128xf32>
    %c0_55 = arith.constant 0 : index
    %c0_56 = arith.constant 0 : index
    %c0_57 = arith.constant 0 : index
    %c10 = arith.constant 10 : index
    %49 = vector.load %arg1[%c0_55, %c0_56, %c0_57, %c10] : memref<1x4x4x256xf32, #tpu.memory_space<vmem>>, vector<1x1x4x128xf32>
    %50 = vector.shape_cast %49 : vector<1x1x4x128xf32> to vector<4x128xf32>
    %c8 = arith.constant 8 : index
    %c0_58 = arith.constant 0 : index
    %c0_59 = arith.constant 0 : index
    %51 = vector.load %arg2[%c8, %c0_58, %c0_59] : memref<9x8x4xf32, #tpu.memory_space<vmem>>, vector<1x8x4xf32>
    %52 = vector.shape_cast %51 : vector<1x8x4xf32> to vector<8x4xf32>
    %cst_60 = arith.constant dense<0.000000e+00> : vector<8x128xf32>
    %53 = tpu.matmul %52, %50, %cst_60 {dimension_numbers = #tpu.dot_dimension_numbers<[1], [0], [0], [1], [0, 0, 1, 1], [], []>} : vector<8x4xf32>, vector<4x128xf32>, vector<8x128xf32> -> vector<8x128xf32>
    %54 = arith.addf %48, %53 : vector<8x128xf32>
    %c0_61 = arith.constant 0 : index
    %c0_62 = arith.constant 0 : index
    %55 = vector.load %arg4[%c0_61, %c0_62] : memref<1x128xf32, #tpu.memory_space<vmem>>, vector<1x128xf32>
    %56 = vector.broadcast %55 : vector<1x128xf32> to vector<8x128xf32>
    %57 = arith.mulf %54, %56 : vector<8x128xf32>
    %cst_63 = arith.constant dense<0.000000e+00> : vector<8xf32>
    %58 = vector.multi_reduction <add>, %57, %cst_63 [1] : vector<8x128xf32> to vector<8xf32>
    %59 = vector.shape_cast %58 : vector<8xf32> to vector<8x1xf32>
    %60 = arith.mulf %54, %54 : vector<8x128xf32>
    %61 = vector.broadcast %55 : vector<1x128xf32> to vector<8x128xf32>
    %62 = arith.mulf %60, %61 : vector<8x128xf32>
    %cst_64 = arith.constant dense<0.000000e+00> : vector<8xf32>
    %63 = vector.multi_reduction <add>, %62, %cst_64 [1] : vector<8x128xf32> to vector<8xf32>
    %64 = vector.shape_cast %63 : vector<8xf32> to vector<8x1xf32>
    %cst_65 = arith.constant 1.562500e-02 : f32
    %65 = vector.broadcast %cst_65 : f32 to vector<8x1xf32>
    %66 = arith.mulf %59, %65 : vector<8x1xf32>
    %cst_66 = arith.constant 1.562500e-02 : f32
    %67 = vector.broadcast %cst_66 : f32 to vector<8x1xf32>
    %68 = arith.mulf %64, %67 : vector<8x1xf32>
    %69 = arith.mulf %66, %66 : vector<8x1xf32>
    %70 = arith.subf %68, %69 : vector<8x1xf32>
    %c0_67 = arith.constant 0 : index
    %c0_68 = arith.constant 0 : index
    %71 = vector.load %arg3[%c0_67, %c0_68] : memref<8x2xf32, #tpu.memory_space<vmem>>, vector<8x1xf32>
    %c0_69 = arith.constant 0 : index
    %c1_70 = arith.constant 1 : index
    %72 = vector.load %arg3[%c0_69, %c1_70] : memref<8x2xf32, #tpu.memory_space<vmem>>, vector<8x1xf32>
    %cst_71 = arith.constant 9.99999974E-6 : f32
    %73 = vector.broadcast %cst_71 : f32 to vector<8x1xf32>
    %74 = arith.addf %70, %73 : vector<8x1xf32>
    %75 = math.rsqrt %74 : vector<8x1xf32>
    %76 = arith.mulf %71, %75 : vector<8x1xf32>
    %77 = arith.mulf %66, %76 : vector<8x1xf32>
    %78 = arith.subf %72, %77 : vector<8x1xf32>
    %79 = vector.broadcast %76 : vector<8x1xf32> to vector<8x128xf32>
    %80 = arith.mulf %54, %79 : vector<8x128xf32>
    %81 = vector.broadcast %78 : vector<8x1xf32> to vector<8x128xf32>
    %82 = arith.addf %80, %81 : vector<8x128xf32>
    %cst_72 = arith.constant 0.000000e+00 : f32
    %83 = vector.broadcast %cst_72 : f32 to vector<8x128xf32>
    %84 = arith.cmpf oge, %82, %83 : vector<8x128xf32>
    %cst_73 = arith.constant 0.00999999977 : f32
    %85 = vector.broadcast %cst_73 : f32 to vector<8x128xf32>
    %86 = arith.mulf %85, %82 : vector<8x128xf32>
    %87 = arith.select %84, %82, %86 : vector<8x128xi1>, vector<8x128xf32>
    %c0_74 = arith.constant 0 : index
    %c0_75 = arith.constant 0 : index
    %c0_76 = arith.constant 0 : index
    %88 = vector.load %arg5[%c0_74, %c0_75, %c0_76] : memref<1x8x128xf32, #tpu.memory_space<vmem>>, vector<1x8x128xf32>
    %89 = vector.shape_cast %88 : vector<1x8x128xf32> to vector<8x128xf32>
    %90 = vector.shape_cast %87 : vector<8x128xf32> to vector<1x8x128xf32>
    tpu.vector_store %arg5[%c0_74, %c0_75, %c0_76], %90 {strides = array<i32>} : memref<1x8x128xf32, #tpu.memory_space<vmem>>, vector<1x8x128xf32>,
    return
  }
  func.func @transform_0(%arg0: i32) -> (i32, i32, i32, i32) {
    %c0_i32 = arith.constant 0 : i32
    %c0_i32_0 = arith.constant 0 : i32
    %c0_i32_1 = arith.constant 0 : i32
    %c0_i32_2 = arith.constant 0 : i32
    return %arg0, %c0_i32, %c0_i32_0, %c0_i32_1 : i32, i32, i32, i32
  }
  func.func @transform_1(%arg0: i32) -> (i32, i32, i32) {
    %c0_i32 = arith.constant 0 : i32
    %c0_i32_0 = arith.constant 0 : i32
    %c0_i32_1 = arith.constant 0 : i32
    %c0_i32_2 = arith.constant 0 : i32
    return %c0_i32, %c0_i32_0, %c0_i32_1 : i32, i32, i32
  }
  func.func @transform_2(%arg0: i32) -> (i32, i32) {
    %c0_i32 = arith.constant 0 : i32
    %c0_i32_0 = arith.constant 0 : i32
    %c0_i32_1 = arith.constant 0 : i32
    return %c0_i32, %c0_i32_0 : i32, i32
  }
  func.func @transform_3(%arg0: i32) -> (i32, i32) {
    %c0_i32 = arith.constant 0 : i32
    %c0_i32_0 = arith.constant 0 : i32
    %c0_i32_1 = arith.constant 0 : i32
    return %c0_i32, %c0_i32_0 : i32, i32
  }
  func.func @transform_4(%arg0: i32) -> (i32, i32, i32) {
    %c0_i32 = arith.constant 0 : i32
    %c0_i32_0 = arith.constant 0 : i32
    %c0_i32_1 = arith.constant 0 : i32
    return %arg0, %c0_i32, %c0_i32_0 : i32, i32, i32
  }
}

</mosaic_0001>

<llo_original>
// kernel: tpu_custom_call.1
$region0: #{tpu_custom_call.1}
  #allocation0 [shape = 'u32[]', space=smem, size = 0x4, offset = 0x4, fixed_abs, tag = 'smem constant byte address 0x4 - core index']
  #allocation1 [shape = 'u32[144,128]{1,0:T(1,128)}', space=vmem, size = 0x12000, scoped, tag = 'internal scratch']
  %s0 = inlined_call_operand.vmem [shape: f32[2,4,4,256], index: 0, kind: input, shape index: {}]
  %s1 = inlined_call_operand.vmem [shape: f32[9,8,4], index: 1, kind: input, shape index: {}]
  %s2 = inlined_call_operand.vmem [shape: f32[8,2], index: 2, kind: input, shape index: {}]
  %s3 = inlined_call_operand.vmem [shape: f32[1,128], index: 3, kind: input, shape index: {}]
  %s4 = inlined_call_operand.hbm [shape: f32[2,8,128], index: 4, kind: output, shape index: {}]
  %s5 = sld [smem:[#allocation0]]
  $region49: #{tpu_custom_call.1} parent=0
    _
  %s7 = ssub.s32 1, %s5
  %s8 = scalar_select 0, %s7, %s5
  $region1: #{tpu_custom_call.1} parent=0
    #allocation2 [shape = 'u8[8192]{0}', space=vmem, size = 0x2000, scoped, tag = 'output window, operand 0']
    #allocation3 [shape = 's32[2]{0}', space=sflag, size = 0x8, scoped, tag = 'scoped memory for tpu_custom_call.1']
    %9 = vsyncpa [#allocation3], 0
    %s10 = scalar_lea.sflag [#allocation3], 1
    %11 = vsyncpa %s10, 0
    loop: start=0, step=1, limit=4
    $region2: #{tpu_custom_call.1} parent=1 // loop_pre_header
      _
    $region3: #{tpu_custom_call.1} parent=1 // loop_header
      %s13 = sphi 0, %s17
      %p14 = scmp.ge.s32.totalorder %s13, 4
      %s23 = sphi 0, %s25
      %s26 = sphi 0, %s23
      %s27 = sphi 0, %s26
      %s43 = sphi 0, %s27
      %s47 = sphi 0, %s47
      %s49 = sphi 0, %s47
      %s50 = sphi 0, %s49
      %s64 = sphi 0, %s50
      %s68 = sphi 0, %s68
      %s70 = sphi 0, %s68
      %s71 = sphi 0, %s70
      %s85 = sphi 0, %s71
      %s89 = sphi 0, %s89
      %s91 = sphi 0, %s89
      %s92 = sphi 0, %s91
      %s106 = sphi 0, %s92
      %s112 = sphi 0, %s114
      %s115 = sphi 0, %s112
      %s116 = sphi 0, %s115
      %s132 = sphi 0, %s116
    $region4: #{tpu_custom_call.1} parent=1 // loop_header_branch
      %16 = sbr.rel (%p14) target = $region8
    $region5: #{tpu_custom_call.1} parent=1 // loop_body
      %s18 = ssub.s32 %s13, 1
      %s19 = ssub.s32 %s13, 2
      %s20 = sadd.s32 %s13, 1
      %s21 = ssub.s32 %s13, %s20
      %p22 = scmp.eq.s32.totalorder %s21, 0
      %s24 = sadd.s32 %s23, 1
      %s25 = scalar_select %p22, %s23, %s24
      %p28 = pneg %p22
      %p29 = scmp.eq.s32.totalorder %s13, 1
      %p30 = por %p28, %p29
      %p31 = scmp.ne.s32.totalorder %s23, %s26
      %p32 = scmp.eq.s32.totalorder %s13, 0
      %p33 = por %p31, %p32
      %p34 = scmp.ne.s32.totalorder %s23, %s26
      %p35 = scmp.eq.s32.totalorder %s18, 1
      %p36 = por %p34, %p35
      %p37 = scmp.ne.s32.totalorder %s26, %s27
      %p38 = scmp.eq.s32.totalorder %s18, 0
      %p39 = por %p37, %p38
      %p40 = scmp.ne.s32.totalorder %s26, %s27
      %p41 = scmp.eq.s32.totalorder %s19, 1
      %p42 = por %p40, %p41
      %p44 = scmp.ne.s32.totalorder %s27, %s43
      %p45 = scmp.eq.s32.totalorder %s19, 0
      %p46 = por %p44, %p45
      %s48 = sadd.s32 %s47, 1
      %p51 = scmp.eq.s32.totalorder %s13, 1
      %p52 = scmp.ne.s32.totalorder %s47, %s49
      %p53 = scmp.eq.s32.totalorder %s13, 0
      %p54 = por %p52, %p53
      %p55 = scmp.ne.s32.totalorder %s47, %s49
      %p56 = scmp.eq.s32.totalorder %s18, 1
      %p57 = por %p55, %p56
      %p58 = scmp.ne.s32.totalorder %s49, %s50
      %p59 = scmp.eq.s32.totalorder %s18, 0
      %p60 = por %p58, %p59
      %p61 = scmp.ne.s32.totalorder %s49, %s50
      %p62 = scmp.eq.s32.totalorder %s19, 1
      %p63 = por %p61, %p62
      %p65 = scmp.ne.s32.totalorder %s50, %s64
      %p66 = scmp.eq.s32.totalorder %s19, 0
      %p67 = por %p65, %p66
      %s69 = sadd.s32 %s68, 1
      %p72 = scmp.eq.s32.totalorder %s13, 1
      %p73 = scmp.ne.s32.totalorder %s68, %s70
      %p74 = scmp.eq.s32.totalorder %s13, 0
      %p75 = por %p73, %p74
      %p76 = scmp.ne.s32.totalorder %s68, %s70
      %p77 = scmp.eq.s32.totalorder %s18, 1
      %p78 = por %p76, %p77
      %p79 = scmp.ne.s32.totalorder %s70, %s71
      %p80 = scmp.eq.s32.totalorder %s18, 0
      %p81 = por %p79, %p80
      %p82 = scmp.ne.s32.totalorder %s70, %s71
      %p83 = scmp.eq.s32.totalorder %s19, 1
      %p84 = por %p82, %p83
      %p86 = scmp.ne.s32.totalorder %s71, %s85
      %p87 = scmp.eq.s32.totalorder %s19, 0
      %p88 = por %p86, %p87
      %s90 = sadd.s32 %s89, 1
      %p93 = scmp.eq.s32.totalorder %s13, 1
      %p94 = scmp.ne.s32.totalorder %s89, %s91
      %p95 = scmp.eq.s32.totalorder %s13, 0
      %p96 = por %p94, %p95
      %p97 = scmp.ne.s32.totalorder %s89, %s91
      %p98 = scmp.eq.s32.totalorder %s18, 1
      %p99 = por %p97, %p98
      %p100 = scmp.ne.s32.totalorder %s91, %s92
      %p101 = scmp.eq.s32.totalorder %s18, 0
      %p102 = por %p100, %p101
      %p103 = scmp.ne.s32.totalorder %s91, %s92
      %p104 = scmp.eq.s32.totalorder %s19, 1
      %p105 = por %p103, %p104
      %p107 = scmp.ne.s32.totalorder %s92, %s106
      %p108 = scmp.eq.s32.totalorder %s19, 0
      %p109 = por %p107, %p108
      %s110 = ssub.s32 %s13, %s20
      %p111 = scmp.eq.s32.totalorder %s110, 0
      %s113 = sadd.s32 %s112, 1
      %s114 = scalar_select %p111, %s112, %s113
      %p117 = pneg %p111
      %p118 = scmp.eq.s32.totalorder %s13, 1
      %p119 = por %p117, %p118
      %p120 = scmp.ne.s32.totalorder %s112, %s115
      %p121 = scmp.eq.s32.totalorder %s13, 0
      %p122 = por %p120, %p121
      %p123 = scmp.ne.s32.totalorder %s112, %s115
      %p124 = scmp.eq.s32.totalorder %s18, 1
      %p125 = por %p123, %p124
      %p126 = scmp.ne.s32.totalorder %s115, %s116
      %p127 = scmp.eq.s32.totalorder %s18, 0
      %p128 = por %p126, %p127
      %p129 = scmp.ne.s32.totalorder %s115, %s116
      %p130 = scmp.eq.s32.totalorder %s19, 1
      %p131 = por %p129, %p130
      %p133 = scmp.ne.s32.totalorder %s116, %s132
      %p134 = scmp.eq.s32.totalorder %s19, 0
      %p135 = por %p133, %p134
      %p136 = scmp.le.s32.totalorder 1, %s13
      %p137 = scmp.lt.s32.totalorder %s13, 3
      %p138 = pnand %p136, %p137
      %p139 = pneg %p138
      // Predicated region
      $region9: #{tpu_custom_call.1} parent=5 // pred_check
        _
      $region10: #{tpu_custom_call.1} parent=5 // pred_check_branch
        %141 = sbr.rel (%p138) target = $region12
      $region11: #{tpu_custom_call.1} parent=5 // pred_region
        %s142 = ssub.s32 %s13, 1
        // Predicated region
        $region13: #{tpu_custom_call.1} parent=11 // pred_check
          %p143 = pneg %p60
        $region14: #{tpu_custom_call.1} parent=11 // pred_check_branch
          %145 = sbr.rel (%p143) target = $region16
        $region15: #{tpu_custom_call.1} parent=11 // pred_region
          _
        $region16: #{tpu_custom_call.1} parent=11 // pred_fallthru
          _
        // Predicated region
        $region17: #{tpu_custom_call.1} parent=11 // pred_check
          %p146 = pneg %p81
        $region18: #{tpu_custom_call.1} parent=11 // pred_check_branch
          %148 = sbr.rel (%p146) target = $region20
        $region19: #{tpu_custom_call.1} parent=11 // pred_region
          _
        $region20: #{tpu_custom_call.1} parent=11 // pred_fallthru
          _
        // Predicated region
        $region21: #{tpu_custom_call.1} parent=11 // pred_check
          %p149 = pneg %p102
        $region22: #{tpu_custom_call.1} parent=11 // pred_check_branch
          %151 = sbr.rel (%p149) target = $region24
        $region23: #{tpu_custom_call.1} parent=11 // pred_region
          _
        $region24: #{tpu_custom_call.1} parent=11 // pred_fallthru
          _
      $region12: #{tpu_custom_call.1} parent=5 // pred_fallthru
        _
      %p152 = scmp.lt.s32.totalorder %s13, 2
      // Predicated region
      $region25: #{tpu_custom_call.1} parent=5 // pred_check
        %p153 = pneg %p152
      $region26: #{tpu_custom_call.1} parent=5 // pred_check_branch
        %155 = sbr.rel (%p153) target = $region28
      $region27: #{tpu_custom_call.1} parent=5 // pred_region
        // Predicated region
        $region29: #{tpu_custom_call.1} parent=27 // pred_check
          %p156 = pneg %p33
        $region30: #{tpu_custom_call.1} parent=27 // pred_check_branch
          %158 = sbr.rel (%p156) target = $region32
        $region31: #{tpu_custom_call.1} parent=27 // pred_region
          %p159 = scmp.lt.s32.totalorder %s13, 1
          %s160 = scalar_select %p159, %s13, 1
          %s161 = smul.addr %s160, 8
          %s162 = smul.addr %s161, 4
          %s163 = scalar_lea.vmem %s0, %s162
        $region32: #{tpu_custom_call.1} parent=27 // pred_fallthru
          _
      $region28: #{tpu_custom_call.1} parent=5 // pred_fallthru
        _
      %p164 = scmp.le.s32.totalorder 1, %s13
      %p165 = scmp.lt.s32.totalorder %s13, 3
      %p166 = pnand %p164, %p165
      %p167 = pneg %p166
      // Predicated region
      $region33: #{tpu_custom_call.1} parent=5 // pred_check
        _
      $region34: #{tpu_custom_call.1} parent=5 // pred_check_branch
        %169 = sbr.rel (%p166) target = $region36
      $region35: #{tpu_custom_call.1} parent=5 // pred_region
        %s170 = ssub.s32 %s13, 1
        %p171 = scmp.lt.s32.totalorder %s18, 1
        %s172 = scalar_select %p171, %s18, 1
        %s173 = smul.addr %s172, 8
        %s174 = smul.addr %s173, 4
        %s175 = scalar_lea.vmem %s0, %s174
        %p176 = pneg %p39
        %p177 = pneg %p36
        %p178 = pneg %p60
        %p179 = pneg %p57
        %p180 = pneg %p81
        %p181 = pneg %p78
        %p182 = pneg %p102
        %p183 = pneg %p99
        %p184 = pneg %p128
        %p185 = pneg %p125
        %s186 = sand.u32 %s115, 1
        %s187 = scalar_lea.sflag [#allocation3], %s186
        %s188 = sand.u32 %s115, 1
        %s189 = smul.addr %s188, 8
        %s190 = scalar_lea.vmem [#allocation2], %s189
        %p191 = scmp.lt.s32.totalorder %s18, 1
        %s192 = scalar_select %p191, %s18, 1
        %s193 = smul.addr %s192, 8
        %s194 = smul.addr %s193, 4
        %s195 = scalar_lea.vmem %s0, %s194
        %v196 = vld [vmem:[%s195] sm:$0xf]
        %v197 = vld [vmem:[%s1] sm:$0xff]
        %s198 = scalar_lea.vmem %s195, 8
        %v199 = vld [vmem:[%s198] sm:$0xf]
        %s200 = scalar_lea.vmem %s1, 8
        %v201 = vld [vmem:[%s200] sm:$0xff]
        %vm202 = vcmask 31744
        %v204 = vsel %vm202, %v201, 0
        %vm206 = vcmask 1043456
        %v208 = vsel %vm206, %v199, 0
        %210 = vmatprep.subr.mxu0 0.0
        %211 = vmatpush1.msra.mxu0 %v208
        %212 = vmatprep.subr.mxu0 0.0
        %213 = vmatpush1.msra.mxu0 0.0
        %214 = vmatprep.subr.mxu0 0.0
        %215 = vmatpush1.msra.mxu0 0.0
        %216 = vmatprep.subr.mxu0 0.0
        %217 = vmatpush1.msra.mxu0 0.0
        %218 = vmatprep.subr.mxu0 0.0
        %219 = vmatpush1.msra.mxu0 0.0
        %220 = vmatprep.subr.mxu0 0.0
        %221 = vmatpush1.msra.mxu0 0.0
        %222 = vmatprep.subr.mxu0 0.0
        %223 = vmatpush1.msra.mxu0 0.0
        %224 = vmatprep.subr.mxu0 0.0
        %225 = vmatpush1.msra.mxu0 0.0
        %226 = vmatprep.subr.mxu0 0.0
        %227 = vmatpush1.msra.mxu0 0.0
        %228 = vmatprep.subr.mxu0 0.0
        %229 = vmatpush1.msra.mxu0 0.0
        %230 = vmatprep.subr.mxu0 0.0
        %231 = vmatpush1.msra.mxu0 0.0
        %232 = vmatprep.subr.mxu0 0.0
        %233 = vmatpush1.msra.mxu0 0.0
        %234 = vmatprep.subr.mxu0 0.0
        %235 = vmatpush1.msra.mxu0 0.0
        %236 = vmatprep.subr.mxu0 0.0
        %237 = vmatpush1.msra.mxu0 0.0
        %238 = vmatprep.subr.mxu0 0.0
        %239 = vmatpush1.msra.mxu0 0.0
        %240 = vmatprep.subr.mxu0 0.0
        %241 = vmatpush1.msra.mxu0 0.0
        %242 = vmatprep.subr.mxu0 0.0
        %243 = vmatpush1.msra.mxu0 0.0
        %244 = vmatprep.subr.mxu0 0.0
        %245 = vmatpush1.msra.mxu0 0.0
        %246 = vmatprep.subr.mxu0 0.0
        %247 = vmatpush1.msra.mxu0 0.0
        %248 = vmatprep.subr.mxu0 0.0
        %249 = vmatpush1.msra.mxu0 0.0
        %250 = vmatprep.subr.mxu0 0.0
        %251 = vmatpush1.msra.mxu0 0.0
        %252 = vmatprep.subr.mxu0 0.0
        %253 = vmatpush1.msra.mxu0 0.0
        %254 = vmatprep.subr.mxu0 0.0
        %255 = vmatpush1.msra.mxu0 0.0
        %256 = vmatprep.subr.mxu0 0.0
        %257 = vmatpush1.msra.mxu0 0.0
        %258 = vmatprep.subr.mxu0 0.0
        %259 = vmatpush1.msra.mxu0 0.0
        %260 = vmatprep.subr.mxu0 0.0
        %261 = vmatpush1.msra.mxu0 0.0
        %262 = vmatprep.subr.mxu0 0.0
        %263 = vmatpush1.msra.mxu0 0.0
        %264 = vmatprep.subr.mxu0 0.0
        %265 = vmatpush1.msra.mxu0 0.0
        %266 = vmatprep.subr.mxu0 0.0
        %267 = vmatpush1.msra.mxu0 0.0
        %268 = vmatprep.subr.mxu0 0.0
        %269 = vmatpush1.msra.mxu0 0.0
        %270 = vmatprep.subr.mxu0 0.0
        %271 = vmatpush1.msra.mxu0 0.0
        %272 = vmatprep.subr.mxu0 0.0
        %273 = vmatpush1.msra.mxu0 0.0
        %274 = vmatprep.mubr.f32.mxu0 0.0
        %275 = vmatmul.mubr.f32.gmra.mrb[0].mxu0 %v204
        %v276 = vpop.f32.mrb[0].mxu0
        %v277 = vadd.f32 0.0, %v276
        %v278 = vpop.f32.mrb[0].mxu0
        %279 = vdwg.mxu0
        %v281 = vsel %vm202, %v197, 0
        %v284 = vsel %vm206, %v196, 0
        %286 = vmatprep.subr.mxu0 0.0
        %287 = vmatpush1.msra.mxu0 %v284
        %288 = vmatprep.subr.mxu0 0.0
        %289 = vmatpush1.msra.mxu0 0.0
        %290 = vmatprep.subr.mxu0 0.0
        %291 = vmatpush1.msra.mxu0 0.0
        %292 = vmatprep.subr.mxu0 0.0
        %293 = vmatpush1.msra.mxu0 0.0
        %294 = vmatprep.subr.mxu0 0.0
        %295 = vmatpush1.msra.mxu0 0.0
        %296 = vmatprep.subr.mxu0 0.0
        %297 = vmatpush1.msra.mxu0 0.0
        %298 = vmatprep.subr.mxu0 0.0
        %299 = vmatpush1.msra.mxu0 0.0
        %300 = vmatprep.subr.mxu0 0.0
        %301 = vmatpush1.msra.mxu0 0.0
        %302 = vmatprep.subr.mxu0 0.0
        %303 = vmatpush1.msra.mxu0 0.0
        %304 = vmatprep.subr.mxu0 0.0
        %305 = vmatpush1.msra.mxu0 0.0
        %306 = vmatprep.subr.mxu0 0.0
        %307 = vmatpush1.msra.mxu0 0.0
        %308 = vmatprep.subr.mxu0 0.0
        %309 = vmatpush1.msra.mxu0 0.0
        %310 = vmatprep.subr.mxu0 0.0
        %311 = vmatpush1.msra.mxu0 0.0
        %312 = vmatprep.subr.mxu0 0.0
        %313 = vmatpush1.msra.mxu0 0.0
        %314 = vmatprep.subr.mxu0 0.0
        %315 = vmatpush1.msra.mxu0 0.0
        %316 = vmatprep.subr.mxu0 0.0
        %317 = vmatpush1.msra.mxu0 0.0
        %318 = vmatprep.subr.mxu0 0.0
        %319 = vmatpush1.msra.mxu0 0.0
        %320 = vmatprep.subr.mxu0 0.0
        %321 = vmatpush1.msra.mxu0 0.0
        %322 = vmatprep.subr.mxu0 0.0
        %323 = vmatpush1.msra.mxu0 0.0
        %324 = vmatprep.subr.mxu0 0.0
        %325 = vmatpush1.msra.mxu0 0.0
        %326 = vmatprep.subr.mxu0 0.0
        %327 = vmatpush1.msra.mxu0 0.0
        %328 = vmatprep.subr.mxu0 0.0
        %329 = vmatpush1.msra.mxu0 0.0
        %330 = vmatprep.subr.mxu0 0.0
        %331 = vmatpush1.msra.mxu0 0.0
        %332 = vmatprep.subr.mxu0 0.0
        %333 = vmatpush1.msra.mxu0 0.0
        %334 = vmatprep.subr.mxu0 0.0
        %335 = vmatpush1.msra.mxu0 0.0
        %336 = vmatprep.subr.mxu0 0.0
        %337 = vmatpush1.msra.mxu0 0.0
        %338 = vmatprep.subr.mxu0 0.0
        %339 = vmatpush1.msra.mxu0 0.0
        %340 = vmatprep.subr.mxu0 0.0
        %341 = vmatpush1.msra.mxu0 0.0
        %342 = vmatprep.subr.mxu0 0.0
        %343 = vmatpush1.msra.mxu0 0.0
        %344 = vmatprep.subr.mxu0 0.0
        %345 = vmatpush1.msra.mxu0 0.0
        %346 = vmatprep.subr.mxu0 0.0
        %347 = vmatpush1.msra.mxu0 0.0
        %348 = vmatprep.subr.mxu0 0.0
        %349 = vmatpush1.msra.mxu0 0.0
        %350 = vmatprep.mubr.f32.mxu0 0.0
        %351 = vmatmul.mubr.f32.gmra.mrb[0].mxu0 %v281
        %v352 = vpop.f32.mrb[0].mxu0
        %v353 = vadd.f32 %v277, %v352
        %v354 = vpop.f32.mrb[0].mxu0
        %355 = vdwg.mxu0
        %v356 = vld [vmem:[%s195] sm:$0xff]
        %s357 = scalar_lea.vmem %s1, 16
        %v358 = vld [vmem:[%s357] sm:$0xff]
        %v360 = vcombine.high %v356, %v356
        %361 = vrot.lane.b32.xlu0 %v356, 127
        %v362 = vpop.permute.xlu0 %361
        %363 = vrot.lane.b32.xlu0 %v360, 127
        %v364 = vpop.permute.xlu0 %363
        %vm365 = vcmask 1039360
        %v366 = vsel %vm365, %v362, %v364
        %v368 = vsel %vm202, %v358, 0
        %v370 = vsel %vm206, %v366, 0
        %372 = vmatprep.subr.mxu0 0.0
        %373 = vmatpush1.msra.mxu0 %v370
        %374 = vmatprep.subr.mxu0 0.0
        %375 = vmatpush1.msra.mxu0 0.0
        %376 = vmatprep.subr.mxu0 0.0
        %377 = vmatpush1.msra.mxu0 0.0
        %378 = vmatprep.subr.mxu0 0.0
        %379 = vmatpush1.msra.mxu0 0.0
        %380 = vmatprep.subr.mxu0 0.0
        %381 = vmatpush1.msra.mxu0 0.0
        %382 = vmatprep.subr.mxu0 0.0
        %383 = vmatpush1.msra.mxu0 0.0
        %384 = vmatprep.subr.mxu0 0.0
        %385 = vmatpush1.msra.mxu0 0.0
        %386 = vmatprep.subr.mxu0 0.0
        %387 = vmatpush1.msra.mxu0 0.0
        %388 = vmatprep.subr.mxu0 0.0
        %389 = vmatpush1.msra.mxu0 0.0
        %390 = vmatprep.subr.mxu0 0.0
        %391 = vmatpush1.msra.mxu0 0.0
        %392 = vmatprep.subr.mxu0 0.0
        %393 = vmatpush1.msra.mxu0 0.0
        %394 = vmatprep.subr.mxu0 0.0
        %395 = vmatpush1.msra.mxu0 0.0
        %396 = vmatprep.subr.mxu0 0.0
        %397 = vmatpush1.msra.mxu0 0.0
        %398 = vmatprep.subr.mxu0 0.0
        %399 = vmatpush1.msra.mxu0 0.0
        %400 = vmatprep.subr.mxu0 0.0
        %401 = vmatpush1.msra.mxu0 0.0
        %402 = vmatprep.subr.mxu0 0.0
        %403 = vmatpush1.msra.mxu0 0.0
        %404 = vmatprep.subr.mxu0 0.0
        %405 = vmatpush1.msra.mxu0 0.0
        %406 = vmatprep.subr.mxu0 0.0
        %407 = vmatpush1.msra.mxu0 0.0
        %408 = vmatprep.subr.mxu0 0.0
        %409 = vmatpush1.msra.mxu0 0.0
        %410 = vmatprep.subr.mxu0 0.0
        %411 = vmatpush1.msra.mxu0 0.0
        %412 = vmatprep.subr.mxu0 0.0
        %413 = vmatpush1.msra.mxu0 0.0
        %414 = vmatprep.subr.mxu0 0.0
        %415 = vmatpush1.msra.mxu0 0.0
        %416 = vmatprep.subr.mxu0 0.0
        %417 = vmatpush1.msra.mxu0 0.0
        %418 = vmatprep.subr.mxu0 0.0
        %419 = vmatpush1.msra.mxu0 0.0
        %420 = vmatprep.subr.mxu0 0.0
        %421 = vmatpush1.msra.mxu0 0.0
        %422 = vmatprep.subr.mxu0 0.0
        %423 = vmatpush1.msra.mxu0 0.0
        %424 = vmatprep.subr.mxu0 0.0
        %425 = vmatpush1.msra.mxu0 0.0
        %426 = vmatprep.subr.mxu0 0.0
        %427 = vmatpush1.msra.mxu0 0.0
        %428 = vmatprep.subr.mxu0 0.0
        %429 = vmatpush1.msra.mxu0 0.0
        %430 = vmatprep.subr.mxu0 0.0
        %431 = vmatpush1.msra.mxu0 0.0
        %432 = vmatprep.subr.mxu0 0.0
        %433 = vmatpush1.msra.mxu0 0.0
        %434 = vmatprep.subr.mxu0 0.0
        %435 = vmatpush1.msra.mxu0 0.0
        %436 = vmatprep.mubr.f32.mxu0 0.0
        %437 = vmatmul.mubr.f32.gmra.mrb[0].mxu0 %v368
        %v438 = vpop.f32.mrb[0].mxu0
        %v439 = vadd.f32 0.0, %v438
        %v440 = vpop.f32.mrb[0].mxu0
        %441 = vdwg.mxu0
        %v442 = vadd.f32 %v353, %v439
        %s443 = scalar_lea.vmem %s195, 16
        %v444 = vld [vmem:[%s443] sm:$0xf]
        %s445 = scalar_lea.vmem %s1, 24
        %v446 = vld [vmem:[%s445] sm:$0xff]
        %v448 = vsel %vm202, %v446, 0
        %v451 = vsel %vm206, %v444, 0
        %453 = vmatprep.subr.mxu0 0.0
        %454 = vmatpush1.msra.mxu0 %v451
        %455 = vmatprep.subr.mxu0 0.0
        %456 = vmatpush1.msra.mxu0 0.0
        %457 = vmatprep.subr.mxu0 0.0
        %458 = vmatpush1.msra.mxu0 0.0
        %459 = vmatprep.subr.mxu0 0.0
        %460 = vmatpush1.msra.mxu0 0.0
        %461 = vmatprep.subr.mxu0 0.0
        %462 = vmatpush1.msra.mxu0 0.0
        %463 = vmatprep.subr.mxu0 0.0
        %464 = vmatpush1.msra.mxu0 0.0
        %465 = vmatprep.subr.mxu0 0.0
        %466 = vmatpush1.msra.mxu0 0.0
        %467 = vmatprep.subr.mxu0 0.0
        %468 = vmatpush1.msra.mxu0 0.0
        %469 = vmatprep.subr.mxu0 0.0
        %470 = vmatpush1.msra.mxu0 0.0
        %471 = vmatprep.subr.mxu0 0.0
        %472 = vmatpush1.msra.mxu0 0.0
        %473 = vmatprep.subr.mxu0 0.0
        %474 = vmatpush1.msra.mxu0 0.0
        %475 = vmatprep.subr.mxu0 0.0
        %476 = vmatpush1.msra.mxu0 0.0
        %477 = vmatprep.subr.mxu0 0.0
        %478 = vmatpush1.msra.mxu0 0.0
        %479 = vmatprep.subr.mxu0 0.0
        %480 = vmatpush1.msra.mxu0 0.0
        %481 = vmatprep.subr.mxu0 0.0
        %482 = vmatpush1.msra.mxu0 0.0
        %483 = vmatprep.subr.mxu0 0.0
        %484 = vmatpush1.msra.mxu0 0.0
        %485 = vmatprep.subr.mxu0 0.0
        %486 = vmatpush1.msra.mxu0 0.0
        %487 = vmatprep.subr.mxu0 0.0
        %488 = vmatpush1.msra.mxu0 0.0
        %489 = vmatprep.subr.mxu0 0.0
        %490 = vmatpush1.msra.mxu0 0.0
        %491 = vmatprep.subr.mxu0 0.0
        %492 = vmatpush1.msra.mxu0 0.0
        %493 = vmatprep.subr.mxu0 0.0
        %494 = vmatpush1.msra.mxu0 0.0
        %495 = vmatprep.subr.mxu0 0.0
        %496 = vmatpush1.msra.mxu0 0.0
        %497 = vmatprep.subr.mxu0 0.0
        %498 = vmatpush1.msra.mxu0 0.0
        %499 = vmatprep.subr.mxu0 0.0
        %500 = vmatpush1.msra.mxu0 0.0
        %501 = vmatprep.subr.mxu0 0.0
        %502 = vmatpush1.msra.mxu0 0.0
        %503 = vmatprep.subr.mxu0 0.0
        %504 = vmatpush1.msra.mxu0 0.0
        %505 = vmatprep.subr.mxu0 0.0
        %506 = vmatpush1.msra.mxu0 0.0
        %507 = vmatprep.subr.mxu0 0.0
        %508 = vmatpush1.msra.mxu0 0.0
        %509 = vmatprep.subr.mxu0 0.0
        %510 = vmatpush1.msra.mxu0 0.0
        %511 = vmatprep.subr.mxu0 0.0
        %512 = vmatpush1.msra.mxu0 0.0
        %513 = vmatprep.subr.mxu0 0.0
        %514 = vmatpush1.msra.mxu0 0.0
        %515 = vmatprep.subr.mxu0 0.0
        %516 = vmatpush1.msra.mxu0 0.0
        %517 = vmatprep.mubr.f32.mxu0 0.0
        %518 = vmatmul.mubr.f32.gmra.mrb[0].mxu0 %v448
        %v519 = vpop.f32.mrb[0].mxu0
        %v520 = vadd.f32 0.0, %v519
        %v521 = vpop.f32.mrb[0].mxu0
        %522 = vdwg.mxu0
        %v523 = vadd.f32 %v442, %v520
        %s524 = scalar_lea.vmem %s195, 24
        %v525 = vld [vmem:[%s524] sm:$0xf]
        %s526 = scalar_lea.vmem %s1, 32
        %v527 = vld [vmem:[%s526] sm:$0xff]
        %v529 = vsel %vm202, %v527, 0
        %v532 = vsel %vm206, %v525, 0
        %534 = vmatprep.subr.mxu0 0.0
        %535 = vmatpush1.msra.mxu0 %v532
        %536 = vmatprep.subr.mxu0 0.0
        %537 = vmatpush1.msra.mxu0 0.0
        %538 = vmatprep.subr.mxu0 0.0
        %539 = vmatpush1.msra.mxu0 0.0
        %540 = vmatprep.subr.mxu0 0.0
        %541 = vmatpush1.msra.mxu0 0.0
        %542 = vmatprep.subr.mxu0 0.0
        %543 = vmatpush1.msra.mxu0 0.0
        %544 = vmatprep.subr.mxu0 0.0
        %545 = vmatpush1.msra.mxu0 0.0
        %546 = vmatprep.subr.mxu0 0.0
        %547 = vmatpush1.msra.mxu0 0.0
        %548 = vmatprep.subr.mxu0 0.0
        %549 = vmatpush1.msra.mxu0 0.0
        %550 = vmatprep.subr.mxu0 0.0
        %551 = vmatpush1.msra.mxu0 0.0
        %552 = vmatprep.subr.mxu0 0.0
        %553 = vmatpush1.msra.mxu0 0.0
        %554 = vmatprep.subr.mxu0 0.0
        %555 = vmatpush1.msra.mxu0 0.0
        %556 = vmatprep.subr.mxu0 0.0
        %557 = vmatpush1.msra.mxu0 0.0
        %558 = vmatprep.subr.mxu0 0.0
        %559 = vmatpush1.msra.mxu0 0.0
        %560 = vmatprep.subr.mxu0 0.0
        %561 = vmatpush1.msra.mxu0 0.0
        %562 = vmatprep.subr.mxu0 0.0
        %563 = vmatpush1.msra.mxu0 0.0
        %564 = vmatprep.subr.mxu0 0.0
        %565 = vmatpush1.msra.mxu0 0.0
        %566 = vmatprep.subr.mxu0 0.0
        %567 = vmatpush1.msra.mxu0 0.0
        %568 = vmatprep.subr.mxu0 0.0
        %569 = vmatpush1.msra.mxu0 0.0
        %570 = vmatprep.subr.mxu0 0.0
        %571 = vmatpush1.msra.mxu0 0.0
        %572 = vmatprep.subr.mxu0 0.0
        %573 = vmatpush1.msra.mxu0 0.0
        %574 = vmatprep.subr.mxu0 0.0
        %575 = vmatpush1.msra.mxu0 0.0
        %576 = vmatprep.subr.mxu0 0.0
        %577 = vmatpush1.msra.mxu0 0.0
        %578 = vmatprep.subr.mxu0 0.0
        %579 = vmatpush1.msra.mxu0 0.0
        %580 = vmatprep.subr.mxu0 0.0
        %581 = vmatpush1.msra.mxu0 0.0
        %582 = vmatprep.subr.mxu0 0.0
        %583 = vmatpush1.msra.mxu0 0.0
        %584 = vmatprep.subr.mxu0 0.0
        %585 = vmatpush1.msra.mxu0 0.0
        %586 = vmatprep.subr.mxu0 0.0
        %587 = vmatpush1.msra.mxu0 0.0
        %588 = vmatprep.subr.mxu0 0.0
        %589 = vmatpush1.msra.mxu0 0.0
        %590 = vmatprep.subr.mxu0 0.0
        %591 = vmatpush1.msra.mxu0 0.0
        %592 = vmatprep.subr.mxu0 0.0
        %593 = vmatpush1.msra.mxu0 0.0
        %594 = vmatprep.subr.mxu0 0.0
        %595 = vmatpush1.msra.mxu0 0.0
        %596 = vmatprep.subr.mxu0 0.0
        %597 = vmatpush1.msra.mxu0 0.0
        %598 = vmatprep.mubr.f32.mxu0 0.0
        %599 = vmatmul.mubr.f32.gmra.mrb[0].mxu0 %v529
        %v600 = vpop.f32.mrb[0].mxu0
        %v601 = vadd.f32 0.0, %v600
        %v602 = vpop.f32.mrb[0].mxu0
        %603 = vdwg.mxu0
        %v604 = vadd.f32 %v523, %v601
        %v605 = vld [vmem:[%s443] sm:$0xff]
        %s606 = scalar_lea.vmem %s1, 40
        %v607 = vld [vmem:[%s606] sm:$0xff]
        %v609 = vcombine.high %v605, %v605
        %610 = vrot.lane.b32.xlu0 %v605, 127
        %v611 = vpop.permute.xlu0 %610
        %612 = vrot.lane.b32.xlu0 %v609, 127
        %v613 = vpop.permute.xlu0 %612
        %v614 = vsel %vm365, %v611, %v613
        %v616 = vsel %vm202, %v607, 0
        %v618 = vsel %vm206, %v614, 0
        %620 = vmatprep.subr.mxu0 0.0
        %621 = vmatpush1.msra.mxu0 %v618
        %622 = vmatprep.subr.mxu0 0.0
        %623 = vmatpush1.msra.mxu0 0.0
        %624 = vmatprep.subr.mxu0 0.0
        %625 = vmatpush1.msra.mxu0 0.0
        %626 = vmatprep.subr.mxu0 0.0
        %627 = vmatpush1.msra.mxu0 0.0
        %628 = vmatprep.subr.mxu0 0.0
        %629 = vmatpush1.msra.mxu0 0.0
        %630 = vmatprep.subr.mxu0 0.0
        %631 = vmatpush1.msra.mxu0 0.0
        %632 = vmatprep.subr.mxu0 0.0
        %633 = vmatpush1.msra.mxu0 0.0
        %634 = vmatprep.subr.mxu0 0.0
        %635 = vmatpush1.msra.mxu0 0.0
        %636 = vmatprep.subr.mxu0 0.0
        %637 = vmatpush1.msra.mxu0 0.0
        %638 = vmatprep.subr.mxu0 0.0
        %639 = vmatpush1.msra.mxu0 0.0
        %640 = vmatprep.subr.mxu0 0.0
        %641 = vmatpush1.msra.mxu0 0.0
        %642 = vmatprep.subr.mxu0 0.0
        %643 = vmatpush1.msra.mxu0 0.0
        %644 = vmatprep.subr.mxu0 0.0
        %645 = vmatpush1.msra.mxu0 0.0
        %646 = vmatprep.subr.mxu0 0.0
        %647 = vmatpush1.msra.mxu0 0.0
        %648 = vmatprep.subr.mxu0 0.0
        %649 = vmatpush1.msra.mxu0 0.0
        %650 = vmatprep.subr.mxu0 0.0
        %651 = vmatpush1.msra.mxu0 0.0
        %652 = vmatprep.subr.mxu0 0.0
        %653 = vmatpush1.msra.mxu0 0.0
        %654 = vmatprep.subr.mxu0 0.0
        %655 = vmatpush1.msra.mxu0 0.0
        %656 = vmatprep.subr.mxu0 0.0
        %657 = vmatpush1.msra.mxu0 0.0
        %658 = vmatprep.subr.mxu0 0.0
        %659 = vmatpush1.msra.mxu0 0.0
        %660 = vmatprep.subr.mxu0 0.0
        %661 = vmatpush1.msra.mxu0 0.0
        %662 = vmatprep.subr.mxu0 0.0
        %663 = vmatpush1.msra.mxu0 0.0
        %664 = vmatprep.subr.mxu0 0.0
        %665 = vmatpush1.msra.mxu0 0.0
        %666 = vmatprep.subr.mxu0 0.0
        %667 = vmatpush1.msra.mxu0 0.0
        %668 = vmatprep.subr.mxu0 0.0
        %669 = vmatpush1.msra.mxu0 0.0
        %670 = vmatprep.subr.mxu0 0.0
        %671 = vmatpush1.msra.mxu0 0.0
        %672 = vmatprep.subr.mxu0 0.0
        %673 = vmatpush1.msra.mxu0 0.0
        %674 = vmatprep.subr.mxu0 0.0
        %675 = vmatpush1.msra.mxu0 0.0
        %676 = vmatprep.subr.mxu0 0.0
        %677 = vmatpush1.msra.mxu0 0.0
        %678 = vmatprep.subr.mxu0 0.0
        %679 = vmatpush1.msra.mxu0 0.0
        %680 = vmatprep.subr.mxu0 0.0
        %681 = vmatpush1.msra.mxu0 0.0
        %682 = vmatprep.subr.mxu0 0.0
        %683 = vmatpush1.msra.mxu0 0.0
        %684 = vmatprep.mubr.f32.mxu0 0.0
        %685 = vmatmul.mubr.f32.gmra.mrb[0].mxu0 %v616
        %v686 = vpop.f32.mrb[0].mxu0
        %v687 = vadd.f32 0.0, %v686
        %v688 = vpop.f32.mrb[0].mxu0
        %689 = vdwg.mxu0
        %v690 = vadd.f32 %v604, %v687
        %v691 = vld [vmem:[%s195] sm:$0xff]
        %s692 = scalar_lea.vmem %s1, 48
        %v693 = vld [vmem:[%s692] sm:$0xff]
        %v695 = vcombine.high %v691, %v691
        %696 = vrot.lane.b32.xlu0 %v691, 119
        %v697 = vpop.permute.xlu0 %696
        %698 = vrot.lane.b32.xlu0 %v695, 119
        %v699 = vpop.permute.xlu0 %698
        %vm700 = vcmask 973824
        %v701 = vsel %vm700, %v697, %v699
        %v703 = vsel %vm202, %v693, 0
        %v705 = vsel %vm206, %v701, 0
        %707 = vmatprep.subr.mxu0 0.0
        %708 = vmatpush1.msra.mxu0 %v705
        %709 = vmatprep.subr.mxu0 0.0
        %710 = vmatpush1.msra.mxu0 0.0
        %711 = vmatprep.subr.mxu0 0.0
        %712 = vmatpush1.msra.mxu0 0.0
        %713 = vmatprep.subr.mxu0 0.0
        %714 = vmatpush1.msra.mxu0 0.0
        %715 = vmatprep.subr.mxu0 0.0
        %716 = vmatpush1.msra.mxu0 0.0
        %717 = vmatprep.subr.mxu0 0.0
        %718 = vmatpush1.msra.mxu0 0.0
        %719 = vmatprep.subr.mxu0 0.0
        %720 = vmatpush1.msra.mxu0 0.0
        %721 = vmatprep.subr.mxu0 0.0
        %722 = vmatpush1.msra.mxu0 0.0
        %723 = vmatprep.subr.mxu0 0.0
        %724 = vmatpush1.msra.mxu0 0.0
        %725 = vmatprep.subr.mxu0 0.0
        %726 = vmatpush1.msra.mxu0 0.0
        %727 = vmatprep.subr.mxu0 0.0
        %728 = vmatpush1.msra.mxu0 0.0
        %729 = vmatprep.subr.mxu0 0.0
        %730 = vmatpush1.msra.mxu0 0.0
        %731 = vmatprep.subr.mxu0 0.0
        %732 = vmatpush1.msra.mxu0 0.0
        %733 = vmatprep.subr.mxu0 0.0
        %734 = vmatpush1.msra.mxu0 0.0
        %735 = vmatprep.subr.mxu0 0.0
        %736 = vmatpush1.msra.mxu0 0.0
        %737 = vmatprep.subr.mxu0 0.0
        %738 = vmatpush1.msra.mxu0 0.0
        %739 = vmatprep.subr.mxu0 0.0
        %740 = vmatpush1.msra.mxu0 0.0
        %741 = vmatprep.subr.mxu0 0.0
        %742 = vmatpush1.msra.mxu0 0.0
        %743 = vmatprep.subr.mxu0 0.0
        %744 = vmatpush1.msra.mxu0 0.0
        %745 = vmatprep.subr.mxu0 0.0
        %746 = vmatpush1.msra.mxu0 0.0
        %747 = vmatprep.subr.mxu0 0.0
        %748 = vmatpush1.msra.mxu0 0.0
        %749 = vmatprep.subr.mxu0 0.0
        %750 = vmatpush1.msra.mxu0 0.0
        %751 = vmatprep.subr.mxu0 0.0
        %752 = vmatpush1.msra.mxu0 0.0
        %753 = vmatprep.subr.mxu0 0.0
        %754 = vmatpush1.msra.mxu0 0.0
        %755 = vmatprep.subr.mxu0 0.0
        %756 = vmatpush1.msra.mxu0 0.0
        %757 = vmatprep.subr.mxu0 0.0
        %758 = vmatpush1.msra.mxu0 0.0
        %759 = vmatprep.subr.mxu0 0.0
        %760 = vmatpush1.msra.mxu0 0.0
        %761 = vmatprep.subr.mxu0 0.0
        %762 = vmatpush1.msra.mxu0 0.0
        %763 = vmatprep.subr.mxu0 0.0
        %764 = vmatpush1.msra.mxu0 0.0
        %765 = vmatprep.subr.mxu0 0.0
        %766 = vmatpush1.msra.mxu0 0.0
        %767 = vmatprep.subr.mxu0 0.0
        %768 = vmatpush1.msra.mxu0 0.0
        %769 = vmatprep.subr.mxu0 0.0
        %770 = vmatpush1.msra.mxu0 0.0
        %771 = vmatprep.mubr.f32.mxu0 0.0
        %772 = vmatmul.mubr.f32.gmra.mrb[0].mxu0 %v703
        %v773 = vpop.f32.mrb[0].mxu0
        %v774 = vadd.f32 0.0, %v773
        %v775 = vpop.f32.mrb[0].mxu0
        %776 = vdwg.mxu0
        %v777 = vadd.f32 %v690, %v774
        %v778 = vld [vmem:[%s198] sm:$0xff]
        %s779 = scalar_lea.vmem %s1, 56
        %v780 = vld [vmem:[%s779] sm:$0xff]
        %v782 = vcombine.high %v778, %v778
        %783 = vrot.lane.b32.xlu0 %v778, 119
        %v784 = vpop.permute.xlu0 %783
        %785 = vrot.lane.b32.xlu0 %v782, 119
        %v786 = vpop.permute.xlu0 %785
        %v787 = vsel %vm700, %v784, %v786
        %v789 = vsel %vm202, %v780, 0
        %v791 = vsel %vm206, %v787, 0
        %793 = vmatprep.subr.mxu0 0.0
        %794 = vmatpush1.msra.mxu0 %v791
        %795 = vmatprep.subr.mxu0 0.0
        %796 = vmatpush1.msra.mxu0 0.0
        %797 = vmatprep.subr.mxu0 0.0
        %798 = vmatpush1.msra.mxu0 0.0
        %799 = vmatprep.subr.mxu0 0.0
        %800 = vmatpush1.msra.mxu0 0.0
        %801 = vmatprep.subr.mxu0 0.0
        %802 = vmatpush1.msra.mxu0 0.0
        %803 = vmatprep.subr.mxu0 0.0
        %804 = vmatpush1.msra.mxu0 0.0
        %805 = vmatprep.subr.mxu0 0.0
        %806 = vmatpush1.msra.mxu0 0.0
        %807 = vmatprep.subr.mxu0 0.0
        %808 = vmatpush1.msra.mxu0 0.0
        %809 = vmatprep.subr.mxu0 0.0
        %810 = vmatpush1.msra.mxu0 0.0
        %811 = vmatprep.subr.mxu0 0.0
        %812 = vmatpush1.msra.mxu0 0.0
        %813 = vmatprep.subr.mxu0 0.0
        %814 = vmatpush1.msra.mxu0 0.0
        %815 = vmatprep.subr.mxu0 0.0
        %816 = vmatpush1.msra.mxu0 0.0
        %817 = vmatprep.subr.mxu0 0.0
        %818 = vmatpush1.msra.mxu0 0.0
        %819 = vmatprep.subr.mxu0 0.0
        %820 = vmatpush1.msra.mxu0 0.0
        %821 = vmatprep.subr.mxu0 0.0
        %822 = vmatpush1.msra.mxu0 0.0
        %823 = vmatprep.subr.mxu0 0.0
        %824 = vmatpush1.msra.mxu0 0.0
        %825 = vmatprep.subr.mxu0 0.0
        %826 = vmatpush1.msra.mxu0 0.0
        %827 = vmatprep.subr.mxu0 0.0
        %828 = vmatpush1.msra.mxu0 0.0
        %829 = vmatprep.subr.mxu0 0.0
        %830 = vmatpush1.msra.mxu0 0.0
        %831 = vmatprep.subr.mxu0 0.0
        %832 = vmatpush1.msra.mxu0 0.0
        %833 = vmatprep.subr.mxu0 0.0
        %834 = vmatpush1.msra.mxu0 0.0
        %835 = vmatprep.subr.mxu0 0.0
        %836 = vmatpush1.msra.mxu0 0.0
        %837 = vmatprep.subr.mxu0 0.0
        %838 = vmatpush1.msra.mxu0 0.0
        %839 = vmatprep.subr.mxu0 0.0
        %840 = vmatpush1.msra.mxu0 0.0
        %841 = vmatprep.subr.mxu0 0.0
        %842 = vmatpush1.msra.mxu0 0.0
        %843 = vmatprep.subr.mxu0 0.0
        %844 = vmatpush1.msra.mxu0 0.0
        %845 = vmatprep.subr.mxu0 0.0
        %846 = vmatpush1.msra.mxu0 0.0
        %847 = vmatprep.subr.mxu0 0.0
        %848 = vmatpush1.msra.mxu0 0.0
        %849 = vmatprep.subr.mxu0 0.0
        %850 = vmatpush1.msra.mxu0 0.0
        %851 = vmatprep.subr.mxu0 0.0
        %852 = vmatpush1.msra.mxu0 0.0
        %853 = vmatprep.subr.mxu0 0.0
        %854 = vmatpush1.msra.mxu0 0.0
        %855 = vmatprep.subr.mxu0 0.0
        %856 = vmatpush1.msra.mxu0 0.0
        %857 = vmatprep.mubr.f32.mxu0 0.0
        %858 = vmatmul.mubr.f32.gmra.mrb[0].mxu0 %v789
        %v859 = vpop.f32.mrb[0].mxu0
        %v860 = vadd.f32 0.0, %v859
        %v861 = vpop.f32.mrb[0].mxu0
        %862 = vdwg.mxu0
        %v863 = vadd.f32 %v777, %v860
        %v864 = vld [vmem:[%s195] sm:$0xff]
        %s865 = scalar_lea.vmem %s1, 64
        %v866 = vld [vmem:[%s865] sm:$0xff]
        %v868 = vcombine.high %v864, %v864
        %869 = vrot.lane.b32.xlu0 %v864, 118
        %v870 = vpop.permute.xlu0 %869
        %871 = vrot.lane.b32.xlu0 %v868, 118
        %v872 = vpop.permute.xlu0 %871
        %vm873 = vcmask 965632
        %v874 = vsel %vm873, %v870, %v872
        %v876 = vsel %vm202, %v866, 0
        %v878 = vsel %vm206, %v874, 0
        %880 = vmatprep.subr.mxu0 0.0
        %881 = vmatpush1.msra.mxu0 %v878
        %882 = vmatprep.subr.mxu0 0.0
        %883 = vmatpush1.msra.mxu0 0.0
        %884 = vmatprep.subr.mxu0 0.0
        %885 = vmatpush1.msra.mxu0 0.0
        %886 = vmatprep.subr.mxu0 0.0
        %887 = vmatpush1.msra.mxu0 0.0
        %888 = vmatprep.subr.mxu0 0.0
        %889 = vmatpush1.msra.mxu0 0.0
        %890 = vmatprep.subr.mxu0 0.0
        %891 = vmatpush1.msra.mxu0 0.0
        %892 = vmatprep.subr.mxu0 0.0
        %893 = vmatpush1.msra.mxu0 0.0
        %894 = vmatprep.subr.mxu0 0.0
        %895 = vmatpush1.msra.mxu0 0.0
        %896 = vmatprep.subr.mxu0 0.0
        %897 = vmatpush1.msra.mxu0 0.0
        %898 = vmatprep.subr.mxu0 0.0
        %899 = vmatpush1.msra.mxu0 0.0
        %900 = vmatprep.subr.mxu0 0.0
        %901 = vmatpush1.msra.mxu0 0.0
        %902 = vmatprep.subr.mxu0 0.0
        %903 = vmatpush1.msra.mxu0 0.0
        %904 = vmatprep.subr.mxu0 0.0
        %905 = vmatpush1.msra.mxu0 0.0
        %906 = vmatprep.subr.mxu0 0.0
        %907 = vmatpush1.msra.mxu0 0.0
        %908 = vmatprep.subr.mxu0 0.0
        %909 = vmatpush1.msra.mxu0 0.0
        %910 = vmatprep.subr.mxu0 0.0
        %911 = vmatpush1.msra.mxu0 0.0
        %912 = vmatprep.subr.mxu0 0.0
        %913 = vmatpush1.msra.mxu0 0.0
        %914 = vmatprep.subr.mxu0 0.0
        %915 = vmatpush1.msra.mxu0 0.0
        %916 = vmatprep.subr.mxu0 0.0
        %917 = vmatpush1.msra.mxu0 0.0
        %918 = vmatprep.subr.mxu0 0.0
        %919 = vmatpush1.msra.mxu0 0.0
        %920 = vmatprep.subr.mxu0 0.0
        %921 = vmatpush1.msra.mxu0 0.0
        %922 = vmatprep.subr.mxu0 0.0
        %923 = vmatpush1.msra.mxu0 0.0
        %924 = vmatprep.subr.mxu0 0.0
        %925 = vmatpush1.msra.mxu0 0.0
        %926 = vmatprep.subr.mxu0 0.0
        %927 = vmatpush1.msra.mxu0 0.0
        %928 = vmatprep.subr.mxu0 0.0
        %929 = vmatpush1.msra.mxu0 0.0
        %930 = vmatprep.subr.mxu0 0.0
        %931 = vmatpush1.msra.mxu0 0.0
        %932 = vmatprep.subr.mxu0 0.0
        %933 = vmatpush1.msra.mxu0 0.0
        %934 = vmatprep.subr.mxu0 0.0
        %935 = vmatpush1.msra.mxu0 0.0
        %936 = vmatprep.subr.mxu0 0.0
        %937 = vmatpush1.msra.mxu0 0.0
        %938 = vmatprep.subr.mxu0 0.0
        %939 = vmatpush1.msra.mxu0 0.0
        %940 = vmatprep.subr.mxu0 0.0
        %941 = vmatpush1.msra.mxu0 0.0
        %942 = vmatprep.subr.mxu0 0.0
        %943 = vmatpush1.msra.mxu0 0.0
        %944 = vmatprep.mubr.f32.mxu0 0.0
        %945 = vmatmul.mubr.f32.gmra.mrb[0].mxu0 %v876
        %v946 = vpop.f32.mrb[0].mxu0
        %v947 = vadd.f32 0.0, %v946
        %v948 = vpop.f32.mrb[0].mxu0
        %949 = vdwg.mxu0
        %v950 = vadd.f32 %v863, %v947
        %v951 = vld [vmem:[%s3] sm:$0x1]
        %v953 = vlaneseq
        %v954 = vshrl.u32 %v953, 7
        %v955 = vsub.s32 0, %v954
        %v956 = vrot.slane %v951, %v955
        %v958 = vmul.f32 %v950, %v956
        %959 = vadd.xlane.f32.xlu0 %v958
        %v960 = vpop.xlane.xlu0 %959
        %v961 = vmul.f32 %v950, %v950
        %v962 = vmul.f32 %v961, %v956
        %963 = vadd.xlane.f32.xlu0 %v962
        %v964 = vpop.xlane.xlu0 %963
        %v965 = vmul.f32 %v960, 0.015625
        %v966 = vmul.f32 %v964, 0.015625
        %v967 = vmul.f32 %v965, %v965
        %v968 = vsub.f32 %v966, %v967
        %v969 = vld [vmem:[%s2] sm:$0xff]
        %v970 = vadd.f32 %v968, 1e-05
        %v971 = vrsqrt.pop %v970
        %v972 = vmul.f32 %v969, %v971
        %v973 = vmul.f32 %v965, %v972
        %975 = vrot.lane.b32.xlu0 %v973, 1
        %v976 = vpop.permute.xlu0 %975
        %v978 = vsub.f32 %v969, %v976
        %980 = vset.pattern.permute.xlu0 0
        %981 = vperm.xlu0 %980, %v972
        %v982 = vpop.permute.xlu0 %981
        %v984 = vmul.f32 %v950, %v982
        %986 = vset.pattern.permute.xlu0 1
        %987 = vperm.xlu0 %986, %v978
        %v988 = vpop.permute.xlu0 %987
        %v990 = vadd.f32 %v984, %v988
        %vm991 = vcmp.ge.f32.partialorder %v990, 0.0
        %v992 = vmul.f32 %v990, 0.01
        %v993 = vsel %vm991, %v990, %v992
        %994 = vst [vmem:[%s190] sm:$0xff] %v993
        %s995 = sand.u32 %s115, 1
        %s996 = scalar_lea.sflag [#allocation3], %s995
        %s997 = sand.u32 %s115, 1
        %s998 = smul.addr %s997, 8
        %s999 = scalar_lea.vmem [#allocation2], %s998
        // Predicated region
        $region37: #{tpu_custom_call.1} parent=35 // pred_check
          %p1000 = pneg %p125
        $region38: #{tpu_custom_call.1} parent=35 // pred_check_branch
          %1002 = sbr.rel (%p1000) target = $region40
        $region39: #{tpu_custom_call.1} parent=35 // pred_region
          %s1004 = ssub.s32 128, 128
          %1005 = vsyncadd %s996, %s1004
          %s1006 = smul.addr %s18, 128
          %s1007 = scalar_lea.hbm %s4, %s1006
          %s1009 = sshll.u32 %s999, 4
          %s1010 = int_to_ptr.vmem [resolvable:$true] %s1009
          %1012 = dma.vmem_to_hbm [thread:$0]  %s1010, 128, %s1007, %s996
        $region40: #{tpu_custom_call.1} parent=35 // pred_fallthru
          _
      $region36: #{tpu_custom_call.1} parent=5 // pred_fallthru
        _
      %p1013 = scmp.le.s32.totalorder 2, %s13
      // Predicated region
      $region41: #{tpu_custom_call.1} parent=5 // pred_check
        %p1014 = pneg %p1013
      $region42: #{tpu_custom_call.1} parent=5 // pred_check_branch
        %1016 = sbr.rel (%p1014) target = $region44
      $region43: #{tpu_custom_call.1} parent=5 // pred_region
        %s1017 = ssub.s32 %s13, 2
        // Predicated region
        $region45: #{tpu_custom_call.1} parent=43 // pred_check
          %p1018 = pneg %p131
        $region46: #{tpu_custom_call.1} parent=43 // pred_check_branch
          %1020 = sbr.rel (%p1018) target = $region48
        $region47: #{tpu_custom_call.1} parent=43 // pred_region
          %s1021 = sand.u32 %s116, 1
          %s1022 = scalar_lea.sflag [#allocation3], %s1021
          %s1023 = sand.u32 %s116, 1
          %s1024 = smul.addr %s1023, 8
          %s1025 = scalar_lea.vmem [#allocation2], %s1024
          %1026 = dma.done %s1022, 128
        $region48: #{tpu_custom_call.1} parent=43 // pred_fallthru
          _
      $region44: #{tpu_custom_call.1} parent=5 // pred_fallthru
        _
    $region6: #{tpu_custom_call.1} parent=1 // loop_footer
      %s17 = sadd.s32 1, %s13
    $region7: #{tpu_custom_call.1} parent=1 // loop_footer_branch
      %12 = sbr.rel target = $region3
    $region8: #{tpu_custom_call.1} parent=1 // loop_exit
      _
    %1027 = vsyncpa [#allocation3], 1
    %s1028 = scalar_lea.sflag [#allocation3], 1
    %1029 = vsyncpa %s1028, 1

</llo_original>
